<compile_context>
chip_gen: v7x
topology: tpu7x:2x2x1
jax: 0.10.0
libtpu: 0.0.40
codegen_flags: <defaults>
</compile_context>

<pallas_src>
import functools

import jax
import jax.numpy as jnp
from jax.experimental import pallas as pl
from jax.experimental.pallas import tpu as pltpu


def _splitting_loss_kernel(y_ref, m_ref, w_ref, out_ref, acc_ref, *,
                           hw, tile_n, bt):
    """Per (batch-block, spatial-tile) step.

    y_ref   : (bt, C, TN) f32 measurement tile (bt batch elements)
    m_ref   : (C, TN)     int8 {0,1} splitting-mask tile (shared across batch)
    w_ref   : (C, C)      f32 synthetic 1x1-conv "model" weight
    out_ref : (1, 1)      f32 per-batch-block squared-error sum (written once,
                          at the last spatial tile)
    acc_ref : (C, TN)     f32 elementwise accumulator, VMEM scratch resident
                          across the spatial (reduction) grid axis
    """
    j = pl.program_id(1)

    @pl.when(j == 0)
    def _init():
        acc_ref[...] = jnp.zeros_like(acc_ref)

    m = m_ref[...].astype(jnp.float32)        # {0,1} int8 -> f32
    not_m = 1.0 - m
    w = w_ref[...]

    has_tail = (hw % tile_n) != 0             # static Python bool
    if has_tail:
        col = jax.lax.broadcasted_iota(jnp.int32, (1, tile_n), 1)
        valid = (j * tile_n + col) < hw       # mask out-of-range lanes (last tile)

    # Static unroll over the bt batch elements sharing this mask tile.
    for i in range(bt):
        y = y_ref[i]                          # (C, TN)
        y1 = m * y                            # inp.A(y)
        # model(y1): 1x1 conv over channels; physics.A = identity.  Tiny MXU
        # sliver, but the kernel is HBM / step-overhead bound, not MXU bound.
        xhat = jnp.dot(w, y1, preferred_element_type=jnp.float32)
        r = not_m * (xhat - y)                # fused: inp2.A(xhat) - y2
        r2 = r * r
        if has_tail:
            r2 = jnp.where(valid, r2, 0.0)    # zero padded lanes (select: NaN-safe)
        acc_ref[...] += r2

    @pl.when(j == pl.num_programs(1) - 1)
    def _finalize():
        out_ref[...] = jnp.sum(acc_ref[...]).reshape(1, 1)


def _round_up(x, m):
    return -(-x // m) * m


def splitting_loss(y, mask, w, split_ratio, *, max_tile_n=32768, max_bt=8,
                   target_working_set=8 * 1024 * 1024):
    """y: (B,C,H,W) f32, mask: (C,H,W) {0,1} (any dtype), w: (C,C) f32 -> scalar."""
    B, C, H, W = y.shape
    HW = H * W

    # Contiguous reshapes only (no transpose, no batch-broadcast of the mask).
    y3d = y.reshape(B, C, HW)                 # channels on sublanes, spatial on lanes
    m2d = mask.reshape(C, HW)
    if m2d.dtype != jnp.int8:
        m2d = m2d.astype(jnp.int8)            # tiny (C,HW) cast, 4x smaller HBM stream

    # Batch sub-block size: largest divisor of B <= max_bt that still leaves
    # >= 2 batch blocks (so the "parallel" axis can use both v7x TensorCores).
    bt = 1
    for d in range(1, min(B, max_bt) + 1):
        if B % d == 0 and B // d >= 2:
            bt = d
    nb = B // bt

    # Layout-aware VMEM budget (sublane padding: f32 rows pad to 8, int8 to 32).
    c_pad_f32 = _round_up(C, 8)
    c_pad_i8 = _round_up(C, 32)
    hw_pad = _round_up(HW, 128)
    bytes_per_lane = (2 * bt * c_pad_f32 * 4    # double-buffered y tiles
                      + 2 * c_pad_i8 * 1        # double-buffered mask tiles
                      + c_pad_f32 * 4)          # accumulator scratch
    tile_n = min(hw_pad,
                 _round_up(max_tile_n, 128),
                 max(128, (target_working_set // bytes_per_lane) // 128 * 128))
    nj = pl.cdiv(HW, tile_n)                    # tail tile handled in-kernel

    # Generation-aware VMEM limit (v7x: 64 MiB physical, v5e/v6e: 128 MiB).
    vmem_est = bytes_per_lane * tile_n + 4 * c_pad_f32 * c_pad_f32 + (1 << 16)
    try:
        vmem_cap = pltpu.get_tpu_info().vmem_capacity_bytes
    except Exception:
        vmem_cap = 64 * 1024 * 1024
    vmem_limit = int(min(max(32 * 1024 * 1024, 2 * vmem_est),
                         vmem_cap * 3 // 4,
                         100 * 1024 * 1024))

    kernel = functools.partial(_splitting_loss_kernel, hw=HW, tile_n=tile_n, bt=bt)

    partial_sums = pl.pallas_call(
        kernel,
        out_shape=jax.ShapeDtypeStruct((nb, 1, 1), jnp.float32),
        grid_spec=pltpu.PrefetchScalarGridSpec(
            num_scalar_prefetch=0,
            grid=(nb, nj),
            in_specs=[
                # bt batch elements, spatial chunk j
                pl.BlockSpec((bt, C, tile_n), lambda b, j: (b, 0, j)),
                # mask tile: shared across the batch axis
                pl.BlockSpec((C, tile_n), lambda b, j: (0, j)),
                # model weight: single resident block
                pl.BlockSpec((C, C), lambda b, j: (0, 0)),
            ],
            # one scalar per batch block, written only at the last spatial tile
            out_specs=pl.BlockSpec((None, 1, 1), lambda b, j: (b, 0, 0)),
            scratch_shapes=[pltpu.VMEM((C, tile_n), jnp.float32)],
        ),
        compiler_params=pltpu.CompilerParams(
            dimension_semantics=("parallel", "arbitrary"),
            vmem_limit_bytes=vmem_limit,
        ),
    )(y3d, m2d, w)

    total = jnp.sum(partial_sums)               # (nb,) scalars -> scalar
    loss = total / jnp.float32(B * C * H * W) / jnp.float32(1.0 - split_ratio)
    return loss


def _reference_loss(y, mask_f32, w, split_ratio):
    """Pure-JAX reference mirroring the PyTorch forward."""
    B, C, H, W = y.shape
    m = jnp.broadcast_to(mask_f32[None], (B, C, H, W))
    y1 = m * y
    xhat = jnp.einsum("oc,bchw->bohw", w, y1)
    y2 = (1.0 - m) * y
    loss = jnp.mean(((1.0 - m) * xhat - y2) ** 2)
    return loss / (1.0 - split_ratio)


if __name__ == "__main__":
    key = jax.random.PRNGKey(0)
    k_y, k_mask, k_w = jax.random.split(key, 3)

    B, C, H, W = 2, 4, 16, 16
    split_ratio = 0.9

    y = jax.random.normal(k_y, (B, C, H, W), dtype=jnp.float32)

    # Random splitting mask (regular_mask=False): 0 where rand > split_ratio.
    rand = jax.random.uniform(k_mask, (C, H, W), dtype=jnp.float32)
    mask = (rand <= split_ratio).astype(jnp.int8)

    # Deterministic synthetic "model" weight: identity + small perturbation.
    w = (jnp.eye(C, dtype=jnp.float32)
         + 0.05 * jax.random.normal(k_w, (C, C), dtype=jnp.float32))

    loss = splitting_loss(y, mask, w, split_ratio)
    loss = jax.block_until_ready(loss)

    ref = _reference_loss(y, mask.astype(jnp.float32), w, split_ratio)
    assert jnp.allclose(loss, ref, rtol=1e-5, atol=1e-6), (loss, ref)

    print("KERNEL_OK")
</pallas_src>

<mosaic_0001>
module attributes {stable_mosaic.version = 11 : i64} {
  func.func @_splitting_loss_kernel(%arg0: i32, %arg1: i32, %arg2: memref<1x4x256xf32, #tpu.memory_space<vmem>>, %arg3: memref<4x256xi8, #tpu.memory_space<vmem>>, %arg4: memref<4x4xf32, #tpu.memory_space<vmem>>, %arg5: memref<1x1x1xf32, #tpu.memory_space<vmem>>, %arg6: memref<4x256xf32, #tpu.memory_space<vmem>>) attributes {dimension_semantics = [#tpu.dimension_semantics<parallel>, #tpu.dimension_semantics<arbitrary>], iteration_bounds = array<i64: 2, 1>, scalar_prefetch = 0 : i64, scratch_operands = 1 : i64, tpu.core_type = #tpu.core_type<tc>, window_params = [{transform_indices = @transform_0, window_bounds = array<i64: 1, 4, 256>}, {transform_indices = @transform_1, window_bounds = array<i64: 4, 256>}, {pipeline_mode = #tpu.pipeline_mode<synchronous>, transform_indices = @transform_2, window_bounds = array<i64: 4, 4>}, {transform_indices = @transform_3, window_bounds = array<i64: 1, 1, 1>}]} {
    %c0_i32 = arith.constant 0 : i32
    %0 = arith.cmpi eq, %arg1, %c0_i32 : i32
    %1 = arith.extui %0 : i1 to i32
    %c0_i32_0 = arith.constant 0 : i32
    %2 = arith.cmpi ne, %1, %c0_i32_0 : i32
    scf.if %2 {
      %cst_14 = arith.constant 0.000000e+00 : f32
      %21 = vector.broadcast %cst_14 : f32 to vector<4x256xf32>
      %c0_15 = arith.constant 0 : index
      %c0_16 = arith.constant 0 : index
      %22 = vector.load %arg6[%c0_15, %c0_16] : memref<4x256xf32, #tpu.memory_space<vmem>>, vector<4x256xf32>
      tpu.vector_store %arg6[%c0_15, %c0_16], %21 {strides = array<i32>} : memref<4x256xf32, #tpu.memory_space<vmem>>, vector<4x256xf32>,
    } else {
    }
    %c0 = arith.constant 0 : index
    %c0_1 = arith.constant 0 : index
    %3 = vector.load %arg3[%c0, %c0_1] : memref<4x256xi8, #tpu.memory_space<vmem>>, vector<4x256xi8>
    %4 = arith.sitofp %3 : vector<4x256xi8> to vector<4x256xf32>
    %cst = arith.constant 1.000000e+00 : f32
    %5 = vector.broadcast %cst : f32 to vector<4x256xf32>
    %6 = arith.subf %5, %4 : vector<4x256xf32>
    %c0_2 = arith.constant 0 : index
    %c0_3 = arith.constant 0 : index
    %7 = vector.load %arg4[%c0_2, %c0_3] : memref<4x4xf32, #tpu.memory_space<vmem>>, vector<4x4xf32>
    %c0_4 = arith.constant 0 : index
    %c0_5 = arith.constant 0 : index
    %c0_6 = arith.constant 0 : index
    %8 = vector.load %arg2[%c0_4, %c0_5, %c0_6] : memref<1x4x256xf32, #tpu.memory_space<vmem>>, vector<1x4x256xf32>
    %9 = vector.shape_cast %8 : vector<1x4x256xf32> to vector<4x256xf32>
    %10 = arith.mulf %4, %9 : vector<4x256xf32>
    %cst_7 = arith.constant dense<0.000000e+00> : vector<4x256xf32>
    %11 = tpu.matmul %7, %10, %cst_7 {dimension_numbers = #tpu.dot_dimension_numbers<[1], [0], [0], [1], [0, 0, 1, 1], [], []>} : vector<4x4xf32>, vector<4x256xf32>, vector<4x256xf32> -> vector<4x256xf32>
    %12 = arith.subf %11, %9 : vector<4x256xf32>
    %13 = arith.mulf %6, %12 : vector<4x256xf32>
    %14 = arith.mulf %13, %13 : vector<4x256xf32>
    %c0_8 = arith.constant 0 : index
    %c0_9 = arith.constant 0 : index
    %15 = vector.load %arg6[%c0_8, %c0_9] : memref<4x256xf32, #tpu.memory_space<vmem>>, vector<4x256xf32>
    %16 = arith.addf %15, %14 : vector<4x256xf32>
    %c0_10 = arith.constant 0 : index
    %c0_11 = arith.constant 0 : index
    %17 = vector.load %arg6[%c0_10, %c0_11] : memref<4x256xf32, #tpu.memory_space<vmem>>, vector<4x256xf32>
    tpu.vector_store %arg6[%c0_10, %c0_11], %16 {strides = array<i32>} : memref<4x256xf32, #tpu.memory_space<vmem>>, vector<4x256xf32>,
    %c0_i32_12 = arith.constant 0 : i32
    %18 = arith.cmpi eq, %arg1, %c0_i32_12 : i32
    %19 = arith.extui %18 : i1 to i32
    %c0_i32_13 = arith.constant 0 : i32
    %20 = arith.cmpi ne, %19, %c0_i32_13 : i32
    scf.if %20 {
      %c0_14 = arith.constant 0 : index
      %c0_15 = arith.constant 0 : index
      %21 = vector.load %arg6[%c0_14, %c0_15] : memref<4x256xf32, #tpu.memory_space<vmem>>, vector<4x256xf32>
      %22 = vector.shape_cast %21 : vector<4x256xf32> to vector<1x4x256xf32>
      %cst_16 = arith.constant dense<0.000000e+00> : vector<1xf32>
      %23 = vector.multi_reduction <add>, %22, %cst_16 [1, 2] : vector<1x4x256xf32> to vector<1xf32>
      %24 = vector.shape_cast %23 : vector<1xf32> to vector<1x1x1xf32>
      %25 = vector.extract %24[0, 0, 0] : f32 from vector<1x1x1xf32>
      %26 = vector.broadcast %25 : f32 to vector<1x1xf32>
      %c0_17 = arith.constant 0 : index
      %c0_18 = arith.constant 0 : index
      %c0_19 = arith.constant 0 : index
      %27 = vector.load %arg5[%c0_17, %c0_18, %c0_19] : memref<1x1x1xf32, #tpu.memory_space<vmem>>, vector<1x1x1xf32>
      %28 = vector.shape_cast %27 : vector<1x1x1xf32> to vector<1x1xf32>
      %29 = vector.shape_cast %26 : vector<1x1xf32> to vector<1x1x1xf32>
      tpu.vector_store %arg5[%c0_17, %c0_18, %c0_19], %29 {strides = array<i32>} : memref<1x1x1xf32, #tpu.memory_space<vmem>>, vector<1x1x1xf32>,
    } else {
    }
    return
  }
  func.func @transform_0(%arg0: i32, %arg1: i32) -> (i32, i32, i32) {
    %c0_i32 = arith.constant 0 : i32
    %c0_i32_0 = arith.constant 0 : i32
    return %arg0, %c0_i32, %arg1 : i32, i32, i32
  }
  func.func @transform_1(%arg0: i32, %arg1: i32) -> (i32, i32) {
    %c0_i32 = arith.constant 0 : i32
    %c0_i32_0 = arith.constant 0 : i32
    return %c0_i32, %arg1 : i32, i32
  }
  func.func @transform_2(%arg0: i32, %arg1: i32) -> (i32, i32) {
    %c0_i32 = arith.constant 0 : i32
    %c0_i32_0 = arith.constant 0 : i32
    %c0_i32_1 = arith.constant 0 : i32
    return %c0_i32, %c0_i32_0 : i32, i32
  }
  func.func @transform_3(%arg0: i32, %arg1: i32) -> (i32, i32, i32) {
    %c0_i32 = arith.constant 0 : i32
    %c0_i32_0 = arith.constant 0 : i32
    %c0_i32_1 = arith.constant 0 : i32
    return %arg0, %c0_i32, %c0_i32_0 : i32, i32, i32
  }
}

</mosaic_0001>

<llo_original>
// kernel: tpu_custom_call.1
$region0: #{tpu_custom_call.1}
  #allocation0 [shape = 'u32[]', space=smem, size = 0x4, offset = 0x4, fixed_abs, tag = 'smem constant byte address 0x4 - core index']
  #allocation1 [shape = 'u32[144,128]{1,0:T(1,128)}', space=vmem, size = 0x12000, scoped, tag = 'internal scratch']
  #allocation2 [shape = 'f32[4,256]{1,0:T(4,128)}', space=vmem, size = 0x1000, scoped, tag = 'scratch operand']
  %s0 = inlined_call_operand.hbm [shape: f32[2,4,256], index: 0, kind: input, shape index: {}]
  %s1 = inlined_call_operand.vmem [shape: s8[4,256], index: 1, kind: input, shape index: {}]
  %s2 = inlined_call_operand.vmem [shape: f32[4,4], index: 2, kind: input, shape index: {}]
  %s3 = inlined_call_operand.vmem [shape: f32[2,1,1], index: 3, kind: output, shape index: {}]
  %s4 = sld [smem:[#allocation0]]
  $region57: #{tpu_custom_call.1} parent=0
    _
  %s6 = ssub.s32 1, %s4
  %s7 = scalar_select 0, %s6, %s4
  $region1: #{tpu_custom_call.1} parent=0
    #allocation3 [shape = 'u8[8192]{0}', space=vmem, size = 0x2000, scoped, tag = 'input window, operand 0']
    #allocation4 [shape = 's32[2]{0}', space=sflag, size = 0x8, scoped, tag = 'scoped memory for tpu_custom_call.1']
    %8 = vsyncpa [#allocation4], 0
    %s9 = scalar_lea.sflag [#allocation4], 1
    %10 = vsyncpa %s9, 0
    loop: start=0, step=1, limit=4
    $region2: #{tpu_custom_call.1} parent=1 // loop_pre_header
      _
    $region3: #{tpu_custom_call.1} parent=1 // loop_header
      %s12 = sphi 0, %s16
      %p13 = scmp.ge.s32.totalorder %s12, 4
      %s19 = sphi 0, %s31
      %s20 = sphi 0, %s27
      %s21 = sphi 0, %s19
      %s22 = sphi 0, %s20
      %s23 = sphi 0, %s21
      %s24 = sphi 0, %s22
      %s36 = sphi 0, %s38
      %s39 = sphi 0, %s36
      %s40 = sphi 0, %s39
      %s56 = sphi 0, %s40
      %s62 = sphi 0, %s64
      %s65 = sphi 0, %s62
      %s66 = sphi 0, %s65
      %s82 = sphi 0, %s66
      %s86 = sphi 0, %s86
      %s88 = sphi 0, %s86
      %s89 = sphi 0, %s88
      %s103 = sphi 0, %s89
      %s109 = sphi 0, %s111
      %s112 = sphi 0, %s109
      %s113 = sphi 0, %s112
      %s129 = sphi 0, %s113
    $region4: #{tpu_custom_call.1} parent=1 // loop_header_branch
      %15 = sbr.rel (%p13) target = $region8
    $region5: #{tpu_custom_call.1} parent=1 // loop_body
      %s17 = ssub.s32 %s12, 1
      %s18 = ssub.s32 %s12, 2
      %s25 = sadd.s32 1, %s20
      %p26 = scmp.ge.s32.totalorder %s25, 1
      %s27 = scalar_select %p26, 0, %s25
      %s28 = sadd.s32 1, %s19
      %s29 = scalar_select %p26, %s28, %s19
      %p30 = scmp.ge.s32.totalorder %s29, 2
      %s31 = scalar_select %p30, 0, %s29
      %s32 = ssub.s32 %s19, %s31
      %s33 = ssub.s32 %s20, %s27
      %s34 = sor.u32 %s32, %s33
      %p35 = scmp.eq.s32.totalorder %s34, 0
      %s37 = sadd.s32 %s36, 1
      %s38 = scalar_select %p35, %s36, %s37
      %p41 = pneg %p35
      %p42 = scmp.eq.s32.totalorder %s12, 1
      %p43 = por %p41, %p42
      %p44 = scmp.ne.s32.totalorder %s36, %s39
      %p45 = scmp.eq.s32.totalorder %s12, 0
      %p46 = por %p44, %p45
      %p47 = scmp.ne.s32.totalorder %s36, %s39
      %p48 = scmp.eq.s32.totalorder %s17, 1
      %p49 = por %p47, %p48
      %p50 = scmp.ne.s32.totalorder %s39, %s40
      %p51 = scmp.eq.s32.totalorder %s17, 0
      %p52 = por %p50, %p51
      %p53 = scmp.ne.s32.totalorder %s39, %s40
      %p54 = scmp.eq.s32.totalorder %s18, 1
      %p55 = por %p53, %p54
      %p57 = scmp.ne.s32.totalorder %s40, %s56
      %p58 = scmp.eq.s32.totalorder %s18, 0
      %p59 = por %p57, %p58
      %s60 = ssub.s32 %s20, %s27
      %p61 = scmp.eq.s32.totalorder %s60, 0
      %s63 = sadd.s32 %s62, 1
      %s64 = scalar_select %p61, %s62, %s63
      %p67 = pneg %p61
      %p68 = scmp.eq.s32.totalorder %s12, 1
      %p69 = por %p67, %p68
      %p70 = scmp.ne.s32.totalorder %s62, %s65
      %p71 = scmp.eq.s32.totalorder %s12, 0
      %p72 = por %p70, %p71
      %p73 = scmp.ne.s32.totalorder %s62, %s65
      %p74 = scmp.eq.s32.totalorder %s17, 1
      %p75 = por %p73, %p74
      %p76 = scmp.ne.s32.totalorder %s65, %s66
      %p77 = scmp.eq.s32.totalorder %s17, 0
      %p78 = por %p76, %p77
      %p79 = scmp.ne.s32.totalorder %s65, %s66
      %p80 = scmp.eq.s32.totalorder %s18, 1
      %p81 = por %p79, %p80
      %p83 = scmp.ne.s32.totalorder %s66, %s82
      %p84 = scmp.eq.s32.totalorder %s18, 0
      %p85 = por %p83, %p84
      %s87 = sadd.s32 %s86, 1
      %p90 = scmp.eq.s32.totalorder %s12, 1
      %p91 = scmp.ne.s32.totalorder %s86, %s88
      %p92 = scmp.eq.s32.totalorder %s12, 0
      %p93 = por %p91, %p92
      %p94 = scmp.ne.s32.totalorder %s86, %s88
      %p95 = scmp.eq.s32.totalorder %s17, 1
      %p96 = por %p94, %p95
      %p97 = scmp.ne.s32.totalorder %s88, %s89
      %p98 = scmp.eq.s32.totalorder %s17, 0
      %p99 = por %p97, %p98
      %p100 = scmp.ne.s32.totalorder %s88, %s89
      %p101 = scmp.eq.s32.totalorder %s18, 1
      %p102 = por %p100, %p101
      %p104 = scmp.ne.s32.totalorder %s89, %s103
      %p105 = scmp.eq.s32.totalorder %s18, 0
      %p106 = por %p104, %p105
      %s107 = ssub.s32 %s19, %s31
      %p108 = scmp.eq.s32.totalorder %s107, 0
      %s110 = sadd.s32 %s109, 1
      %s111 = scalar_select %p108, %s109, %s110
      %p114 = pneg %p108
      %p115 = scmp.eq.s32.totalorder %s12, 1
      %p116 = por %p114, %p115
      %p117 = scmp.ne.s32.totalorder %s109, %s112
      %p118 = scmp.eq.s32.totalorder %s12, 0
      %p119 = por %p117, %p118
      %p120 = scmp.ne.s32.totalorder %s109, %s112
      %p121 = scmp.eq.s32.totalorder %s17, 1
      %p122 = por %p120, %p121
      %p123 = scmp.ne.s32.totalorder %s112, %s113
      %p124 = scmp.eq.s32.totalorder %s17, 0
      %p125 = por %p123, %p124
      %p126 = scmp.ne.s32.totalorder %s112, %s113
      %p127 = scmp.eq.s32.totalorder %s18, 1
      %p128 = por %p126, %p127
      %p130 = scmp.ne.s32.totalorder %s113, %s129
      %p131 = scmp.eq.s32.totalorder %s18, 0
      %p132 = por %p130, %p131
      %p133 = scmp.le.s32.totalorder 1, %s12
      %p134 = scmp.lt.s32.totalorder %s12, 3
      %p135 = pnand %p133, %p134
      %p136 = pneg %p135
      // Predicated region
      $region9: #{tpu_custom_call.1} parent=5 // pred_check
        _
      $region10: #{tpu_custom_call.1} parent=5 // pred_check_branch
        %138 = sbr.rel (%p135) target = $region12
      $region11: #{tpu_custom_call.1} parent=5 // pred_region
        %s139 = ssub.s32 %s12, 1
        // Predicated region
        $region13: #{tpu_custom_call.1} parent=11 // pred_check
          %p140 = pneg %p78
        $region14: #{tpu_custom_call.1} parent=11 // pred_check_branch
          %142 = sbr.rel (%p140) target = $region16
        $region15: #{tpu_custom_call.1} parent=11 // pred_region
          %s143 = smul.u32 2, %s22
          %p144 = scmp.lt.s32.totalorder %s143, 1
          %s145 = scalar_select %p144, %s143, 1
          %s146 = scalar_lea.vmem %s1, %s145
          %s147 = smul.u32 2, %s22
        $region16: #{tpu_custom_call.1} parent=11 // pred_fallthru
          _
        // Predicated region
        $region17: #{tpu_custom_call.1} parent=11 // pred_check
          %p148 = pneg %p99
        $region18: #{tpu_custom_call.1} parent=11 // pred_check_branch
          %150 = sbr.rel (%p148) target = $region20
        $region19: #{tpu_custom_call.1} parent=11 // pred_region
          _
        $region20: #{tpu_custom_call.1} parent=11 // pred_fallthru
          _
      $region12: #{tpu_custom_call.1} parent=5 // pred_fallthru
        _
      %p151 = scmp.lt.s32.totalorder %s12, 2
      // Predicated region
      $region21: #{tpu_custom_call.1} parent=5 // pred_check
        %p152 = pneg %p151
      $region22: #{tpu_custom_call.1} parent=5 // pred_check_branch
        %154 = sbr.rel (%p152) target = $region24
      $region23: #{tpu_custom_call.1} parent=5 // pred_region
        // Predicated region
        $region25: #{tpu_custom_call.1} parent=23 // pred_check
          %p155 = pneg %p46
        $region26: #{tpu_custom_call.1} parent=23 // pred_check_branch
          %157 = sbr.rel (%p155) target = $region28
        $region27: #{tpu_custom_call.1} parent=23 // pred_region
          %s158 = sand.u32 %s36, 1
          %s159 = scalar_lea.sflag [#allocation4], %s158
          %s160 = sand.u32 %s36, 1
          %s161 = smul.addr %s160, 8
          %s162 = scalar_lea.vmem [#allocation3], %s161
          %s163 = smul.u32 2, %s20
          %s165 = ssub.s32 128, 128
          %166 = vsyncadd %s159, %s165
          %s167 = smul.addr %s19, 2
          %s168 = sadd.s32 %s163, %s167
          %s169 = smul.addr %s168, 64
          %s170 = scalar_lea.hbm %s0, %s169
          %s172 = sshll.u32 %s162, 4
          %s173 = int_to_ptr.vmem [resolvable:$true] %s172
          %175 = dma.hbm_to_vmem [thread:$0]  %s170, 128, %s173, %s159
        $region28: #{tpu_custom_call.1} parent=23 // pred_fallthru
          _
      $region24: #{tpu_custom_call.1} parent=5 // pred_fallthru
        _
      %p176 = scmp.le.s32.totalorder 1, %s12
      %p177 = scmp.lt.s32.totalorder %s12, 3
      %p178 = pnand %p176, %p177
      %p179 = pneg %p178
      // Predicated region
      $region29: #{tpu_custom_call.1} parent=5 // pred_check
        _
      $region30: #{tpu_custom_call.1} parent=5 // pred_check_branch
        %181 = sbr.rel (%p178) target = $region32
      $region31: #{tpu_custom_call.1} parent=5 // pred_region
        %s182 = ssub.s32 %s12, 1
        %s183 = sand.u32 %s39, 1
        %s184 = scalar_lea.sflag [#allocation4], %s183
        %s185 = sand.u32 %s39, 1
        %s186 = smul.addr %s185, 8
        %s187 = scalar_lea.vmem [#allocation3], %s186
        // Predicated region
        $region33: #{tpu_custom_call.1} parent=31 // pred_check
          %p188 = pneg %p52
        $region34: #{tpu_custom_call.1} parent=31 // pred_check_branch
          %190 = sbr.rel (%p188) target = $region36
        $region35: #{tpu_custom_call.1} parent=31 // pred_region
          %191 = dma.done %s184, 128
        $region36: #{tpu_custom_call.1} parent=31 // pred_fallthru
          _
        %s192 = sand.u32 %s39, 1
        %s193 = scalar_lea.sflag [#allocation4], %s192
        %s194 = sand.u32 %s39, 1
        %s195 = smul.addr %s194, 8
        %s196 = scalar_lea.vmem [#allocation3], %s195
        %p197 = pneg %p52
        %p198 = pneg %p49
        %s199 = smul.u32 2, %s22
        %p200 = scmp.lt.s32.totalorder %s199, 1
        %s201 = scalar_select %p200, %s199, 1
        %s202 = scalar_lea.vmem %s1, %s201
        %p203 = pneg %p78
        %p204 = pneg %p75
        %p205 = pneg %p99
        %p206 = pneg %p96
        %p207 = pneg %p125
        %p208 = pneg %p122
        %p209 = scmp.lt.s32.totalorder %s21, 1
        %s210 = scalar_select %p209, %s21, 1
        %s211 = scalar_lea.vmem %s3, %s210
        %s212 = smul.u32 2, %s22
        %s213 = smul.u32 2, %s22
        %p214 = scmp.lt.s32.totalorder %s213, 1
        %s215 = scalar_select %p214, %s213, 1
        %s216 = scalar_lea.vmem %s1, %s215
        %s217 = smul.u32 2, %s22
        %p218 = scmp.lt.s32.totalorder %s21, 1
        %s219 = scalar_select %p218, %s21, 1
        %s220 = scalar_lea.vmem %s3, %s219
        %p221 = scmp.eq.s32.totalorder %s22, 0
        // Predicated region
        $region37: #{tpu_custom_call.1} parent=31 // pred_check
          %p222 = pneg %p221
        $region38: #{tpu_custom_call.1} parent=31 // pred_check_branch
          %224 = sbr.rel (%p222) target = $region40
        $region39: #{tpu_custom_call.1} parent=31 // pred_region
          %225 = vst [vmem:[#allocation2] sm:$0xff] 0.0
        $region40: #{tpu_custom_call.1} parent=31 // pred_fallthru
          _
        %v226 = vld [vmem:[%s216] sm:$0x3]
        %v227 = vunpack.c.0.s8 %v226
        %v228 = vcvt.s32.f32 %v227
        %v229 = vsub.f32 1.0, %v228
        %v230 = vld [vmem:[%s2] sm:$0xf]
        %v231 = vld [vmem:[%s187] sm:$0xff]
        %v232 = vmul.f32 %v228, %v231
        %v234 = vcombine.high %v232, %v232
        %vm235 = vcmask 31744
        %v237 = vsel %vm235, %v230, 0
        %vm239 = vcmask 1043456
        %v240 = vsel %vm239, %v232, 0
        %v242 = vsel %vm239, %v234, 0
        %244 = vmatprep.subr.mxu0 %v242
        %245 = vmatpush1.msra.mxu0 %v240
        %246 = vmatprep.subr.mxu0 0.0
        %247 = vmatpush1.msra.mxu0 0.0
        %248 = vmatprep.subr.mxu0 0.0
        %249 = vmatpush1.msra.mxu0 0.0
        %250 = vmatprep.subr.mxu0 0.0
        %251 = vmatpush1.msra.mxu0 0.0
        %252 = vmatprep.subr.mxu0 0.0
        %253 = vmatpush1.msra.mxu0 0.0
        %254 = vmatprep.subr.mxu0 0.0
        %255 = vmatpush1.msra.mxu0 0.0
        %256 = vmatprep.subr.mxu0 0.0
        %257 = vmatpush1.msra.mxu0 0.0
        %258 = vmatprep.subr.mxu0 0.0
        %259 = vmatpush1.msra.mxu0 0.0
        %260 = vmatprep.subr.mxu0 0.0
        %261 = vmatpush1.msra.mxu0 0.0
        %262 = vmatprep.subr.mxu0 0.0
        %263 = vmatpush1.msra.mxu0 0.0
        %264 = vmatprep.subr.mxu0 0.0
        %265 = vmatpush1.msra.mxu0 0.0
        %266 = vmatprep.subr.mxu0 0.0
        %267 = vmatpush1.msra.mxu0 0.0
        %268 = vmatprep.subr.mxu0 0.0
        %269 = vmatpush1.msra.mxu0 0.0
        %270 = vmatprep.subr.mxu0 0.0
        %271 = vmatpush1.msra.mxu0 0.0
        %272 = vmatprep.subr.mxu0 0.0
        %273 = vmatpush1.msra.mxu0 0.0
        %274 = vmatprep.subr.mxu0 0.0
        %275 = vmatpush1.msra.mxu0 0.0
        %276 = vmatprep.subr.mxu0 0.0
        %277 = vmatpush1.msra.mxu0 0.0
        %278 = vmatprep.subr.mxu0 0.0
        %279 = vmatpush1.msra.mxu0 0.0
        %280 = vmatprep.subr.mxu0 0.0
        %281 = vmatpush1.msra.mxu0 0.0
        %282 = vmatprep.subr.mxu0 0.0
        %283 = vmatpush1.msra.mxu0 0.0
        %284 = vmatprep.subr.mxu0 0.0
        %285 = vmatpush1.msra.mxu0 0.0
        %286 = vmatprep.subr.mxu0 0.0
        %287 = vmatpush1.msra.mxu0 0.0
        %288 = vmatprep.subr.mxu0 0.0
        %289 = vmatpush1.msra.mxu0 0.0
        %290 = vmatprep.subr.mxu0 0.0
        %291 = vmatpush1.msra.mxu0 0.0
        %292 = vmatprep.subr.mxu0 0.0
        %293 = vmatpush1.msra.mxu0 0.0
        %294 = vmatprep.subr.mxu0 0.0
        %295 = vmatpush1.msra.mxu0 0.0
        %296 = vmatprep.subr.mxu0 0.0
        %297 = vmatpush1.msra.mxu0 0.0
        %298 = vmatprep.subr.mxu0 0.0
        %299 = vmatpush1.msra.mxu0 0.0
        %300 = vmatprep.subr.mxu0 0.0
        %301 = vmatpush1.msra.mxu0 0.0
        %302 = vmatprep.subr.mxu0 0.0
        %303 = vmatpush1.msra.mxu0 0.0
        %304 = vmatprep.subr.mxu0 0.0
        %305 = vmatpush1.msra.mxu0 0.0
        %306 = vmatprep.subr.mxu0 0.0
        %307 = vmatpush1.msra.mxu0 0.0
        %308 = vmatprep.mubr.f32.mxu0 0.0
        %309 = vmatmul.mubr.f32.gmra.mrb[0].mxu0 %v237
        %v310 = vpop.f32.mrb[0].mxu0
        %v311 = vadd.f32 0.0, %v310
        %v312 = vpop.f32.mrb[0].mxu0
        %v313 = vadd.f32 0.0, %v312
        %314 = vdwg.mxu0
        %v316 = vcombine.high %v231, %v231
        %v318 = vsub.f32 %v311, %v231
        %v319 = vsub.f32 %v313, %v316
        %v322 = vcombine.low %v318, %v319
        %v324 = vmul.f32 %v229, %v322
        %v325 = vmul.f32 %v324, %v324
        %v326 = vld [vmem:[#allocation2] sm:$0xff]
        %v327 = vadd.f32 %v326, %v325
        %328 = vst [vmem:[#allocation2] sm:$0xff] %v327
        // Predicated region
        $region41: #{tpu_custom_call.1} parent=31 // pred_check
          %p329 = pneg %p221
        $region42: #{tpu_custom_call.1} parent=31 // pred_check_branch
          %331 = sbr.rel (%p329) target = $region44
        $region43: #{tpu_custom_call.1} parent=31 // pred_region
          %v332 = vld [vmem:[#allocation2] sm:$0xff]
          %v334 = vcombine.high %v332, %v332
          %v336 = vsel %vm239, %v332, 0.0
          %v337 = vsel %vm239, %v334, 0.0
          %v338 = vadd.f32 %v336, %v337
          %339 = vadd.xlane.f32.xlu0 %v338
          %v340 = vpop.xlane.xlu0 %339
          %v341 = vrot.slane %v340, 4
          %v342 = vadd.f32 %v340, %v341
          %v343 = vrot.slane %v342, 2
          %v344 = vadd.f32 %v342, %v343
          %v345 = vrot.slane %v344, 1
          %v346 = vadd.f32 %v344, %v345
          %s347 = vtos %v346
          %v348 = vstv %s347
          %vm349 = vcmask 0
          %350 = vst.msk [vmem:[%s220] sm:$0x1] %vm349, %v348
        $region44: #{tpu_custom_call.1} parent=31 // pred_fallthru
          _
        %p351 = scmp.lt.s32.totalorder %s21, 1
        %s352 = scalar_select %p351, %s21, 1
        %s353 = scalar_lea.vmem %s3, %s352
        // Predicated region
        $region45: #{tpu_custom_call.1} parent=31 // pred_check
          %p354 = pneg %p122
        $region46: #{tpu_custom_call.1} parent=31 // pred_check_branch
          %356 = sbr.rel (%p354) target = $region48
        $region47: #{tpu_custom_call.1} parent=31 // pred_region
          _
        $region48: #{tpu_custom_call.1} parent=31 // pred_fallthru
          _
      $region32: #{tpu_custom_call.1} parent=5 // pred_fallthru
        _
      %p357 = scmp.le.s32.totalorder 2, %s12
      // Predicated region
      $region49: #{tpu_custom_call.1} parent=5 // pred_check
        %p358 = pneg %p357
      $region50: #{tpu_custom_call.1} parent=5 // pred_check_branch
        %360 = sbr.rel (%p358) target = $region52
      $region51: #{tpu_custom_call.1} parent=5 // pred_region
        %s361 = ssub.s32 %s12, 2
        // Predicated region
        $region53: #{tpu_custom_call.1} parent=51 // pred_check
          %p362 = pneg %p128
        $region54: #{tpu_custom_call.1} parent=51 // pred_check_branch
          %364 = sbr.rel (%p362) target = $region56
        $region55: #{tpu_custom_call.1} parent=51 // pred_region
          %p365 = scmp.lt.s32.totalorder %s23, 1
          %s366 = scalar_select %p365, %s23, 1
          %s367 = scalar_lea.vmem %s3, %s366
        $region56: #{tpu_custom_call.1} parent=51 // pred_fallthru
          _
      $region52: #{tpu_custom_call.1} parent=5 // pred_fallthru
        _
    $region6: #{tpu_custom_call.1} parent=1 // loop_footer
      %s16 = sadd.s32 1, %s12
    $region7: #{tpu_custom_call.1} parent=1 // loop_footer_branch
      %11 = sbr.rel target = $region3
    $region8: #{tpu_custom_call.1} parent=1 // loop_exit
      _
    %368 = vsyncpa [#allocation4], 1
    %s369 = scalar_lea.sflag [#allocation4], 1
    %370 = vsyncpa %s369, 1

</llo_original>
